<compile_context>
chip_gen: v6e
topology: v6e:2x2x1
jax: 0.10.0
libtpu: 0.0.40
codegen_flags: <defaults>
</compile_context>

<pallas_src>
import functools

import jax
import jax.numpy as jnp
from jax.experimental import pallas as pl
from jax.experimental.pallas import tpu as pltpu

_SQRT_HALF = 0.7071067811865476


def _round_up(x, m):
    return (x + m - 1) // m * m


def _vmem_capacity_bytes():
    """Queried VMEM capacity; conservative (v7x per-TC) fallback on failure."""
    try:
        info = pltpu.get_tpu_info()
        cap = getattr(info, "vmem_capacity_bytes", None)
        if cap:
            return int(cap)
    except Exception:
        pass
    return 64 * 2**20


def _pick_hidden_tile(h_pad, max_th):
    """Largest multiple-of-128 tile <= max_th dividing h_pad (a 128-multiple)."""
    max_th = max(128, max_th)
    if h_pad <= max_th:
        return h_pad
    cand = (min(max_th, h_pad) // 128) * 128
    while cand > 128:
        if h_pad % cand == 0:
            return cand
        cand -= 128
    return 128


def _erf(x, approx_recip):
    # Abramowitz & Stegun 7.1.26 rational approximation (|err| < 1.5e-7),
    # built from ops with guaranteed Mosaic lowering. The single divide goes
    # through pl.reciprocal so it lands on the EUP instead of the VALU slot.
    a1, a2, a3, a4, a5 = (0.254829592, -0.284496736, 1.421413741,
                          -1.453152027, 1.061405429)
    p = 0.3275911
    ax = jnp.abs(x)
    t = pl.reciprocal(1.0 + p * ax, approx=approx_recip)
    poly = ((((a5 * t + a4) * t + a3) * t + a2) * t + a1) * t
    y = 1.0 - poly * jnp.exp(-ax * ax)
    return jnp.where(x < 0.0, -y, y)


def _gelu_exact(x, approx_recip):
    # Matches torch.nn.GELU() default (erf formulation).
    return 0.5 * x * (1.0 + _erf(x * _SQRT_HALF, approx_recip))


def _ffn_partial(x_ref, w1_ref, b1_ref, w2_ref, approx_recip):
    w1 = w1_ref[...]
    # Cast activations to the streamed weight dtype: bf16 weights get the fast
    # bf16 MXU path and half the DMA bytes. Accumulate in f32 regardless.
    h = jnp.dot(x_ref[...].astype(w1.dtype), w1,
                preferred_element_type=jnp.float32)
    h = h + b1_ref[...].astype(jnp.float32)
    h = _gelu_exact(h, approx_recip)
    w2 = w2_ref[...]
    return jnp.dot(h.astype(w2.dtype), w2, preferred_element_type=jnp.float32)


def _ffn_kernel_f32_out(x_ref, w1_ref, b1_ref, w2_ref, b2_ref, o_ref, *,
                        approx_recip):
    # f32 output: accumulate directly into the resident output block; saves a
    # tm*D*4 byte scratch (matters on v7x's 64 MiB VMEM).
    j = pl.program_id(1)

    @pl.when(j == 0)
    def _init():
        o_ref[...] = jnp.zeros_like(o_ref)

    o_ref[...] += _ffn_partial(x_ref, w1_ref, b1_ref, w2_ref, approx_recip)

    @pl.when(j == pl.num_programs(1) - 1)
    def _finish():
        o_ref[...] = o_ref[...] + b2_ref[...].astype(jnp.float32)


def _ffn_kernel_acc(x_ref, w1_ref, b1_ref, w2_ref, b2_ref, o_ref, acc_ref, *,
                    approx_recip):
    # Non-f32 output: keep an f32 VMEM accumulator, cast on the final store.
    j = pl.program_id(1)

    @pl.when(j == 0)
    def _init():
        acc_ref[...] = jnp.zeros_like(acc_ref)

    acc_ref[...] += _ffn_partial(x_ref, w1_ref, b1_ref, w2_ref, approx_recip)

    @pl.when(j == pl.num_programs(1) - 1)
    def _finish():
        y = acc_ref[...] + b2_ref[...].astype(jnp.float32)
        o_ref[...] = y.astype(o_ref.dtype)


def feedforward(x, w1, b1, w2, b2, *, max_hidden_tile=512):
    """x: (..., D); w1: (D, 4D); b1: (4D,); w2: (4D, D); b2: (D,)."""
    orig_shape = x.shape
    D = orig_shape[-1]
    H = w1.shape[1]
    assert w1.shape == (D, H) and w2.shape == (H, D)
    assert b1.shape == (H,) and b2.shape == (D,)

    x2d = x.reshape(-1, D)
    R = x2d.shape[0]

    x_isz = jnp.dtype(x.dtype).itemsize
    w_isz = jnp.dtype(w1.dtype).itemsize
    o_isz = x_isz
    f32_out = jnp.dtype(x.dtype) == jnp.dtype(jnp.float32)
    # Low-precision weight path already has ~2e-3 relative error, so the
    # approx (EUP) reciprocal inside GELU is free; keep the accurate one for
    # the f32 path to preserve exact-erf fidelity.
    approx_recip = w_isz <= 2

    vmem_cap = _vmem_capacity_bytes()
    budget = vmem_cap // 2  # leave headroom for compiler-internal scratch

    # --- hidden-dim tiling: pad H once to a multiple of 128 (zero columns of
    # W1 / zero b1 -> gelu(0)=0 hidden activations; zero rows of W2 contribute
    # nothing -> numerically exact), then tile with a divisor of the padded
    # size so the weights are never kept fully resident in VMEM.
    H_pad = _round_up(H, 128)
    th = _pick_hidden_tile(H_pad, max_hidden_tile)

    def _fixed_bytes(t):  # double-buffered weight/bias tiles
        return 2 * (D * t + t + t * D + D) * w_isz

    while th > 128 and _fixed_bytes(th) > budget // 2:
        new_th = _pick_hidden_tile(H_pad, max(th - 128, 128))
        if new_th == th:
            break
        th = new_th
    fixed = _fixed_bytes(th)

    if H_pad != H:
        w1 = jnp.pad(w1, ((0, 0), (0, H_pad - H)))
        b1 = jnp.pad(b1, (0, H_pad - H))
        w2 = jnp.pad(w2, ((0, H_pad - H), (0, 0)))

    # --- row tiling: dtype-aware sublane alignment, fitted to the VMEM budget
    # and capped at the MXU-roofline targets (1024 bf16 / 512 f32).
    row_align = {4: 8, 2: 16, 1: 32}.get(x_isz, 8)
    per_row = 2 * D * x_isz + 2 * D * o_isz + th * 4 + th * w_isz
    if not f32_out:
        per_row += D * 4  # f32 accumulator scratch
    tm_cap = 1024 if w_isz <= 2 else 512
    tm_fit = (budget - fixed) // max(per_row, 1)
    tm_fit = max((tm_fit // row_align) * row_align, row_align)
    tm = min(tm_cap, tm_fit, _round_up(R, row_align))
    # Megacore: ensure the 'parallel' row axis has >= 2 tiles whenever the
    # problem allows it so both v7x TensorCores get work.
    if pl.cdiv(R, tm) < 2 and R > row_align:
        tm = _round_up(pl.cdiv(R, 2), row_align)

    grid = (pl.cdiv(R, tm), H_pad // th)

    b1_2d = b1.reshape(1, H_pad)
    b2_2d = b2.reshape(1, D)

    est = fixed + tm * per_row
    vmem_limit = int(min(max(est * 5 // 4, 32 * 2**20), int(vmem_cap * 0.85)))

    cost = pl.CostEstimate(
        flops=4 * R * D * H,
        transcendentals=R * H,  # one exp per hidden activation (erf)
        bytes_accessed=(R * D * x_isz + (D * H + H + H * D + D) * w_isz
                        + R * D * o_isz),
    )

    if f32_out:
        kernel = functools.partial(_ffn_kernel_f32_out,
                                   approx_recip=approx_recip)
        scratch = []
    else:
        kernel = functools.partial(_ffn_kernel_acc, approx_recip=approx_recip)
        scratch = [pltpu.VMEM((tm, D), jnp.float32)]

    out = pl.pallas_call(
        kernel,
        out_shape=jax.ShapeDtypeStruct((R, D), x.dtype),
        grid_spec=pltpu.PrefetchScalarGridSpec(
            num_scalar_prefetch=0,
            grid=grid,
            in_specs=[
                pl.BlockSpec((tm, D), lambda i, j: (i, 0)),   # x row tile
                pl.BlockSpec((D, th), lambda i, j: (0, j)),   # W1 column block
                pl.BlockSpec((1, th), lambda i, j: (0, j)),   # b1 block
                pl.BlockSpec((th, D), lambda i, j: (j, 0)),   # W2 row block
                pl.BlockSpec((1, D), lambda i, j: (0, 0)),    # b2
            ],
            out_specs=pl.BlockSpec((tm, D), lambda i, j: (i, 0)),
            scratch_shapes=scratch,
        ),
        compiler_params=pltpu.CompilerParams(
            dimension_semantics=("parallel", "arbitrary"),
            vmem_limit_bytes=vmem_limit,
        ),
        cost_estimate=cost,
    )(x2d, w1, b1_2d, w2, b2_2d)

    return out.reshape(orig_shape)


def feedforward_ref(x, w1, b1, w2, b2):
    xf = x.astype(jnp.float32)
    h = jnp.dot(xf, w1.astype(jnp.float32),
                precision=jax.lax.Precision.HIGHEST) + b1.astype(jnp.float32)
    h = jax.nn.gelu(h, approximate=False)   # exact erf GELU (PyTorch default)
    y = jnp.dot(h, w2.astype(jnp.float32),
                precision=jax.lax.Precision.HIGHEST) + b2.astype(jnp.float32)
    return y.astype(x.dtype)


if __name__ == "__main__":
    batch, seq, embed_dim = 2, 8, 32
    hidden = 4 * embed_dim

    key = jax.random.PRNGKey(0)
    kx, kw1, kb1, kw2, kb2 = jax.random.split(key, 5)
    x = jax.random.normal(kx, (batch, seq, embed_dim), dtype=jnp.float32)
    # Deterministic GPT-style parameter init.
    w1 = 0.02 * jax.random.normal(kw1, (embed_dim, hidden), dtype=jnp.float32)
    b1 = 0.1 * jax.random.normal(kb1, (hidden,), dtype=jnp.float32)
    w2 = 0.02 * jax.random.normal(kw2, (hidden, embed_dim), dtype=jnp.float32)
    b2 = 0.1 * jax.random.normal(kb2, (embed_dim,), dtype=jnp.float32)

    out = feedforward(x, w1, b1, w2, b2)
    out = jax.block_until_ready(out)

    ref = feedforward_ref(x, w1, b1, w2, b2)
    assert out.shape == x.shape and out.dtype == x.dtype
    max_err = float(jnp.max(jnp.abs(out - ref)))
    assert jnp.allclose(out, ref, atol=5e-4, rtol=5e-3), max_err
    print("KERNEL_OK")
</pallas_src>

<mosaic_0001>
module attributes {stable_mosaic.version = 11 : i64} {
  func.func @_ffn_kernel_f32_out(%arg0: i32, %arg1: i32, %arg2: memref<8x32xf32, #tpu.memory_space<vmem>>, %arg3: memref<32x128xf32, #tpu.memory_space<vmem>>, %arg4: memref<1x128xf32, #tpu.memory_space<vmem>>, %arg5: memref<128x32xf32, #tpu.memory_space<vmem>>, %arg6: memref<1x32xf32, #tpu.memory_space<vmem>>, %arg7: memref<8x32xf32, #tpu.memory_space<vmem>>) attributes {dimension_semantics = [#tpu.dimension_semantics<parallel>, #tpu.dimension_semantics<arbitrary>], iteration_bounds = array<i64: 2, 1>, scalar_prefetch = 0 : i64, scratch_operands = 0 : i64, tpu.core_type = #tpu.core_type<tc>, window_params = [{transform_indices = @transform_0, window_bounds = array<i64: 8, 32>}, {transform_indices = @transform_1, window_bounds = array<i64: 32, 128>}, {transform_indices = @transform_2, window_bounds = array<i64: 1, 128>}, {transform_indices = @transform_3, window_bounds = array<i64: 128, 32>}, {pipeline_mode = #tpu.pipeline_mode<synchronous>, transform_indices = @transform_4, window_bounds = array<i64: 1, 32>}, {transform_indices = @transform_5, window_bounds = array<i64: 8, 32>}]} {
    %c0_i32 = arith.constant 0 : i32
    %0 = arith.cmpi eq, %arg1, %c0_i32 : i32
    %1 = arith.extui %0 : i1 to i32
    %c0_i32_0 = arith.constant 0 : i32
    %2 = arith.cmpi ne, %1, %c0_i32_0 : i32
    scf.if %2 {
      %cst_29 = arith.constant 0.000000e+00 : f32
      %56 = vector.broadcast %cst_29 : f32 to vector<8x32xf32>
      %c0_30 = arith.constant 0 : index
      %c0_31 = arith.constant 0 : index
      %57 = vector.load %arg7[%c0_30, %c0_31] : memref<8x32xf32, #tpu.memory_space<vmem>>, vector<8x32xf32>
      tpu.vector_store %arg7[%c0_30, %c0_31], %56 {strides = array<i32>} : memref<8x32xf32, #tpu.memory_space<vmem>>, vector<8x32xf32>,
    } else {
    }
    %c0 = arith.constant 0 : index
    %c0_1 = arith.constant 0 : index
    %3 = vector.load %arg7[%c0, %c0_1] : memref<8x32xf32, #tpu.memory_space<vmem>>, vector<8x32xf32>
    %c0_2 = arith.constant 0 : index
    %c0_3 = arith.constant 0 : index
    %4 = vector.load %arg3[%c0_2, %c0_3] : memref<32x128xf32, #tpu.memory_space<vmem>>, vector<32x128xf32>
    %c0_4 = arith.constant 0 : index
    %c0_5 = arith.constant 0 : index
    %5 = vector.load %arg2[%c0_4, %c0_5] : memref<8x32xf32, #tpu.memory_space<vmem>>, vector<8x32xf32>
    %cst = arith.constant dense<0.000000e+00> : vector<8x128xf32>
    %6 = tpu.matmul %5, %4, %cst {dimension_numbers = #tpu.dot_dimension_numbers<[1], [0], [0], [1], [0, 0, 1, 1], [], []>} : vector<8x32xf32>, vector<32x128xf32>, vector<8x128xf32> -> vector<8x128xf32>
    %c0_6 = arith.constant 0 : index
    %c0_7 = arith.constant 0 : index
    %7 = vector.load %arg4[%c0_6, %c0_7] : memref<1x128xf32, #tpu.memory_space<vmem>>, vector<1x128xf32>
    %8 = vector.broadcast %7 : vector<1x128xf32> to vector<8x128xf32>
    %9 = arith.addf %6, %8 : vector<8x128xf32>
    %cst_8 = arith.constant 5.000000e-01 : f32
    %10 = vector.broadcast %cst_8 : f32 to vector<8x128xf32>
    %11 = arith.mulf %10, %9 : vector<8x128xf32>
    %cst_9 = arith.constant 0.707106769 : f32
    %12 = vector.broadcast %cst_9 : f32 to vector<8x128xf32>
    %13 = arith.mulf %9, %12 : vector<8x128xf32>
    %14 = math.absf %13 : vector<8x128xf32>
    %cst_10 = arith.constant 0.327591091 : f32
    %15 = vector.broadcast %cst_10 : f32 to vector<8x128xf32>
    %16 = arith.mulf %15, %14 : vector<8x128xf32>
    %cst_11 = arith.constant 1.000000e+00 : f32
    %17 = vector.broadcast %cst_11 : f32 to vector<8x128xf32>
    %18 = arith.addf %17, %16 : vector<8x128xf32>
    %19 = tpu.reciprocal %18 : vector<8x128xf32> -> vector<8x128xf32>
    %cst_12 = arith.constant 1.06140542 : f32
    %20 = vector.broadcast %cst_12 : f32 to vector<8x128xf32>
    %21 = arith.mulf %20, %19 : vector<8x128xf32>
    %cst_13 = arith.constant -1.45315206 : f32
    %22 = vector.broadcast %cst_13 : f32 to vector<8x128xf32>
    %23 = arith.addf %21, %22 : vector<8x128xf32>
    %24 = arith.mulf %23, %19 : vector<8x128xf32>
    %cst_14 = arith.constant 1.42141378 : f32
    %25 = vector.broadcast %cst_14 : f32 to vector<8x128xf32>
    %26 = arith.addf %24, %25 : vector<8x128xf32>
    %27 = arith.mulf %26, %19 : vector<8x128xf32>
    %cst_15 = arith.constant -0.284496725 : f32
    %28 = vector.broadcast %cst_15 : f32 to vector<8x128xf32>
    %29 = arith.addf %27, %28 : vector<8x128xf32>
    %30 = arith.mulf %29, %19 : vector<8x128xf32>
    %cst_16 = arith.constant 0.254829586 : f32
    %31 = vector.broadcast %cst_16 : f32 to vector<8x128xf32>
    %32 = arith.addf %30, %31 : vector<8x128xf32>
    %33 = arith.mulf %32, %19 : vector<8x128xf32>
    %cst_17 = arith.constant 0.000000e+00 : f32
    %34 = vector.broadcast %cst_17 : f32 to vector<8x128xf32>
    %35 = arith.subf %34, %14 : vector<8x128xf32>
    %36 = arith.mulf %35, %14 : vector<8x128xf32>
    %37 = math.exp %36 : vector<8x128xf32>
    %38 = arith.mulf %33, %37 : vector<8x128xf32>
    %cst_18 = arith.constant 1.000000e+00 : f32
    %39 = vector.broadcast %cst_18 : f32 to vector<8x128xf32>
    %40 = arith.subf %39, %38 : vector<8x128xf32>
    %cst_19 = arith.constant 0.000000e+00 : f32
    %41 = vector.broadcast %cst_19 : f32 to vector<8x128xf32>
    %42 = arith.cmpf olt, %13, %41 : vector<8x128xf32>
    %cst_20 = arith.constant 0.000000e+00 : f32
    %43 = vector.broadcast %cst_20 : f32 to vector<8x128xf32>
    %44 = arith.subf %43, %40 : vector<8x128xf32>
    %45 = arith.select %42, %44, %40 : vector<8x128xi1>, vector<8x128xf32>
    %cst_21 = arith.constant 1.000000e+00 : f32
    %46 = vector.broadcast %cst_21 : f32 to vector<8x128xf32>
    %47 = arith.addf %46, %45 : vector<8x128xf32>
    %48 = arith.mulf %11, %47 : vector<8x128xf32>
    %c0_22 = arith.constant 0 : index
    %c0_23 = arith.constant 0 : index
    %49 = vector.load %arg5[%c0_22, %c0_23] : memref<128x32xf32, #tpu.memory_space<vmem>>, vector<128x32xf32>
    %cst_24 = arith.constant dense<0.000000e+00> : vector<8x32xf32>
    %50 = tpu.matmul %48, %49, %cst_24 {dimension_numbers = #tpu.dot_dimension_numbers<[1], [0], [0], [1], [0, 0, 1, 1], [], []>} : vector<8x128xf32>, vector<128x32xf32>, vector<8x32xf32> -> vector<8x32xf32>
    %51 = arith.addf %3, %50 : vector<8x32xf32>
    %c0_25 = arith.constant 0 : index
    %c0_26 = arith.constant 0 : index
    %52 = vector.load %arg7[%c0_25, %c0_26] : memref<8x32xf32, #tpu.memory_space<vmem>>, vector<8x32xf32>
    tpu.vector_store %arg7[%c0_25, %c0_26], %51 {strides = array<i32>} : memref<8x32xf32, #tpu.memory_space<vmem>>, vector<8x32xf32>,
    %c0_i32_27 = arith.constant 0 : i32
    %53 = arith.cmpi eq, %arg1, %c0_i32_27 : i32
    %54 = arith.extui %53 : i1 to i32
    %c0_i32_28 = arith.constant 0 : i32
    %55 = arith.cmpi ne, %54, %c0_i32_28 : i32
    scf.if %55 {
      %c0_29 = arith.constant 0 : index
      %c0_30 = arith.constant 0 : index
      %56 = vector.load %arg7[%c0_29, %c0_30] : memref<8x32xf32, #tpu.memory_space<vmem>>, vector<8x32xf32>
      %c0_31 = arith.constant 0 : index
      %c0_32 = arith.constant 0 : index
      %57 = vector.load %arg6[%c0_31, %c0_32] : memref<1x32xf32, #tpu.memory_space<vmem>>, vector<1x32xf32>
      %58 = vector.broadcast %57 : vector<1x32xf32> to vector<8x32xf32>
      %59 = arith.addf %56, %58 : vector<8x32xf32>
      %c0_33 = arith.constant 0 : index
      %c0_34 = arith.constant 0 : index
      %60 = vector.load %arg7[%c0_33, %c0_34] : memref<8x32xf32, #tpu.memory_space<vmem>>, vector<8x32xf32>
      tpu.vector_store %arg7[%c0_33, %c0_34], %59 {strides = array<i32>} : memref<8x32xf32, #tpu.memory_space<vmem>>, vector<8x32xf32>,
    } else {
    }
    return
  }
  func.func @transform_0(%arg0: i32, %arg1: i32) -> (i32, i32) {
    %c0_i32 = arith.constant 0 : i32
    %c0_i32_0 = arith.constant 0 : i32
    return %arg0, %c0_i32 : i32, i32
  }
  func.func @transform_1(%arg0: i32, %arg1: i32) -> (i32, i32) {
    %c0_i32 = arith.constant 0 : i32
    %c0_i32_0 = arith.constant 0 : i32
    return %c0_i32, %arg1 : i32, i32
  }
  func.func @transform_2(%arg0: i32, %arg1: i32) -> (i32, i32) {
    %c0_i32 = arith.constant 0 : i32
    %c0_i32_0 = arith.constant 0 : i32
    return %c0_i32, %arg1 : i32, i32
  }
  func.func @transform_3(%arg0: i32, %arg1: i32) -> (i32, i32) {
    %c0_i32 = arith.constant 0 : i32
    %c0_i32_0 = arith.constant 0 : i32
    return %arg1, %c0_i32 : i32, i32
  }
  func.func @transform_4(%arg0: i32, %arg1: i32) -> (i32, i32) {
    %c0_i32 = arith.constant 0 : i32
    %c0_i32_0 = arith.constant 0 : i32
    %c0_i32_1 = arith.constant 0 : i32
    return %c0_i32, %c0_i32_0 : i32, i32
  }
  func.func @transform_5(%arg0: i32, %arg1: i32) -> (i32, i32) {
    %c0_i32 = arith.constant 0 : i32
    %c0_i32_0 = arith.constant 0 : i32
    return %arg0, %c0_i32 : i32, i32
  }
}

</mosaic_0001>

<llo_original>
// kernel: tpu_custom_call.1
$region0: #{tpu_custom_call.1}
  #allocation0 [shape = 'u32[]', space=smem, size = 0x4, offset = 0x4, fixed_abs, tag = 'smem constant byte address 0x4 - core index']
  #allocation1 [shape = 'u32[144,128]{1,0:T(1,128)}', space=vmem, size = 0x12000, scoped, tag = 'internal scratch']
  %s0 = inlined_call_operand.vmem [shape: f32[16,32], index: 0, kind: input, shape index: {}]
  %s1 = inlined_call_operand.vmem [shape: f32[32,128], index: 1, kind: input, shape index: {}]
  %s2 = inlined_call_operand.vmem [shape: f32[1,128], index: 2, kind: input, shape index: {}]
  %s3 = inlined_call_operand.vmem [shape: f32[128,32], index: 3, kind: input, shape index: {}]
  %s4 = inlined_call_operand.vmem [shape: f32[1,32], index: 4, kind: input, shape index: {}]
  %s5 = inlined_call_operand.hbm [shape: f32[16,32], index: 5, kind: output, shape index: {}]
  %s6 = sld [smem:[#allocation0]]
  $region61: #{tpu_custom_call.1} parent=0
    _
  %s8 = ssub.s32 1, %s6
  %s9 = scalar_select 0, %s8, %s6
  $region1: #{tpu_custom_call.1} parent=0
    #allocation2 [shape = 'u8[8192]{0}', space=vmem, size = 0x2000, scoped, tag = 'output window, operand 0']
    #allocation3 [shape = 's32[2]{0}', space=sflag, size = 0x8, scoped, tag = 'scoped memory for tpu_custom_call.1']
    %10 = vsyncpa [#allocation3], 0
    %s11 = scalar_lea.sflag [#allocation3], 1
    %12 = vsyncpa %s11, 0
    loop: start=0, step=1, limit=4
    $region2: #{tpu_custom_call.1} parent=1 // loop_pre_header
      _
    $region3: #{tpu_custom_call.1} parent=1 // loop_header
      %s14 = sphi 0, %s18
      %p15 = scmp.ge.s32.totalorder %s14, 4
      %s21 = sphi 0, %s33
      %s22 = sphi 0, %s29
      %s23 = sphi 0, %s21
      %s24 = sphi 0, %s22
      %s25 = sphi 0, %s23
      %s26 = sphi 0, %s24
      %s36 = sphi 0, %s38
      %s39 = sphi 0, %s36
      %s40 = sphi 0, %s39
      %s56 = sphi 0, %s40
      %s62 = sphi 0, %s64
      %s65 = sphi 0, %s62
      %s66 = sphi 0, %s65
      %s82 = sphi 0, %s66
      %s88 = sphi 0, %s90
      %s91 = sphi 0, %s88
      %s92 = sphi 0, %s91
      %s108 = sphi 0, %s92
      %s114 = sphi 0, %s116
      %s117 = sphi 0, %s114
      %s118 = sphi 0, %s117
      %s134 = sphi 0, %s118
      %s138 = sphi 0, %s138
      %s140 = sphi 0, %s138
      %s141 = sphi 0, %s140
      %s155 = sphi 0, %s141
      %s161 = sphi 0, %s163
      %s164 = sphi 0, %s161
      %s165 = sphi 0, %s164
      %s181 = sphi 0, %s165
    $region4: #{tpu_custom_call.1} parent=1 // loop_header_branch
      %17 = sbr.rel (%p15) target = $region8
    $region5: #{tpu_custom_call.1} parent=1 // loop_body
      %s19 = ssub.s32 %s14, 1
      %s20 = ssub.s32 %s14, 2
      %s27 = sadd.s32 1, %s22
      %p28 = scmp.ge.s32.totalorder %s27, 1
      %s29 = scalar_select %p28, 0, %s27
      %s30 = sadd.s32 1, %s21
      %s31 = scalar_select %p28, %s30, %s21
      %p32 = scmp.ge.s32.totalorder %s31, 2
      %s33 = scalar_select %p32, 0, %s31
      %s34 = ssub.s32 %s21, %s33
      %p35 = scmp.eq.s32.totalorder %s34, 0
      %s37 = sadd.s32 %s36, 1
      %s38 = scalar_select %p35, %s36, %s37
      %p41 = pneg %p35
      %p42 = scmp.eq.s32.totalorder %s14, 1
      %p43 = por %p41, %p42
      %p44 = scmp.ne.s32.totalorder %s36, %s39
      %p45 = scmp.eq.s32.totalorder %s14, 0
      %p46 = por %p44, %p45
      %p47 = scmp.ne.s32.totalorder %s36, %s39
      %p48 = scmp.eq.s32.totalorder %s19, 1
      %p49 = por %p47, %p48
      %p50 = scmp.ne.s32.totalorder %s39, %s40
      %p51 = scmp.eq.s32.totalorder %s19, 0
      %p52 = por %p50, %p51
      %p53 = scmp.ne.s32.totalorder %s39, %s40
      %p54 = scmp.eq.s32.totalorder %s20, 1
      %p55 = por %p53, %p54
      %p57 = scmp.ne.s32.totalorder %s40, %s56
      %p58 = scmp.eq.s32.totalorder %s20, 0
      %p59 = por %p57, %p58
      %s60 = ssub.s32 %s22, %s29
      %p61 = scmp.eq.s32.totalorder %s60, 0
      %s63 = sadd.s32 %s62, 1
      %s64 = scalar_select %p61, %s62, %s63
      %p67 = pneg %p61
      %p68 = scmp.eq.s32.totalorder %s14, 1
      %p69 = por %p67, %p68
      %p70 = scmp.ne.s32.totalorder %s62, %s65
      %p71 = scmp.eq.s32.totalorder %s14, 0
      %p72 = por %p70, %p71
      %p73 = scmp.ne.s32.totalorder %s62, %s65
      %p74 = scmp.eq.s32.totalorder %s19, 1
      %p75 = por %p73, %p74
      %p76 = scmp.ne.s32.totalorder %s65, %s66
      %p77 = scmp.eq.s32.totalorder %s19, 0
      %p78 = por %p76, %p77
      %p79 = scmp.ne.s32.totalorder %s65, %s66
      %p80 = scmp.eq.s32.totalorder %s20, 1
      %p81 = por %p79, %p80
      %p83 = scmp.ne.s32.totalorder %s66, %s82
      %p84 = scmp.eq.s32.totalorder %s20, 0
      %p85 = por %p83, %p84
      %s86 = ssub.s32 %s22, %s29
      %p87 = scmp.eq.s32.totalorder %s86, 0
      %s89 = sadd.s32 %s88, 1
      %s90 = scalar_select %p87, %s88, %s89
      %p93 = pneg %p87
      %p94 = scmp.eq.s32.totalorder %s14, 1
      %p95 = por %p93, %p94
      %p96 = scmp.ne.s32.totalorder %s88, %s91
      %p97 = scmp.eq.s32.totalorder %s14, 0
      %p98 = por %p96, %p97
      %p99 = scmp.ne.s32.totalorder %s88, %s91
      %p100 = scmp.eq.s32.totalorder %s19, 1
      %p101 = por %p99, %p100
      %p102 = scmp.ne.s32.totalorder %s91, %s92
      %p103 = scmp.eq.s32.totalorder %s19, 0
      %p104 = por %p102, %p103
      %p105 = scmp.ne.s32.totalorder %s91, %s92
      %p106 = scmp.eq.s32.totalorder %s20, 1
      %p107 = por %p105, %p106
      %p109 = scmp.ne.s32.totalorder %s92, %s108
      %p110 = scmp.eq.s32.totalorder %s20, 0
      %p111 = por %p109, %p110
      %s112 = ssub.s32 %s22, %s29
      %p113 = scmp.eq.s32.totalorder %s112, 0
      %s115 = sadd.s32 %s114, 1
      %s116 = scalar_select %p113, %s114, %s115
      %p119 = pneg %p113
      %p120 = scmp.eq.s32.totalorder %s14, 1
      %p121 = por %p119, %p120
      %p122 = scmp.ne.s32.totalorder %s114, %s117
      %p123 = scmp.eq.s32.totalorder %s14, 0
      %p124 = por %p122, %p123
      %p125 = scmp.ne.s32.totalorder %s114, %s117
      %p126 = scmp.eq.s32.totalorder %s19, 1
      %p127 = por %p125, %p126
      %p128 = scmp.ne.s32.totalorder %s117, %s118
      %p129 = scmp.eq.s32.totalorder %s19, 0
      %p130 = por %p128, %p129
      %p131 = scmp.ne.s32.totalorder %s117, %s118
      %p132 = scmp.eq.s32.totalorder %s20, 1
      %p133 = por %p131, %p132
      %p135 = scmp.ne.s32.totalorder %s118, %s134
      %p136 = scmp.eq.s32.totalorder %s20, 0
      %p137 = por %p135, %p136
      %s139 = sadd.s32 %s138, 1
      %p142 = scmp.eq.s32.totalorder %s14, 1
      %p143 = scmp.ne.s32.totalorder %s138, %s140
      %p144 = scmp.eq.s32.totalorder %s14, 0
      %p145 = por %p143, %p144
      %p146 = scmp.ne.s32.totalorder %s138, %s140
      %p147 = scmp.eq.s32.totalorder %s19, 1
      %p148 = por %p146, %p147
      %p149 = scmp.ne.s32.totalorder %s140, %s141
      %p150 = scmp.eq.s32.totalorder %s19, 0
      %p151 = por %p149, %p150
      %p152 = scmp.ne.s32.totalorder %s140, %s141
      %p153 = scmp.eq.s32.totalorder %s20, 1
      %p154 = por %p152, %p153
      %p156 = scmp.ne.s32.totalorder %s141, %s155
      %p157 = scmp.eq.s32.totalorder %s20, 0
      %p158 = por %p156, %p157
      %s159 = ssub.s32 %s21, %s33
      %p160 = scmp.eq.s32.totalorder %s159, 0
      %s162 = sadd.s32 %s161, 1
      %s163 = scalar_select %p160, %s161, %s162
      %p166 = pneg %p160
      %p167 = scmp.eq.s32.totalorder %s14, 1
      %p168 = por %p166, %p167
      %p169 = scmp.ne.s32.totalorder %s161, %s164
      %p170 = scmp.eq.s32.totalorder %s14, 0
      %p171 = por %p169, %p170
      %p172 = scmp.ne.s32.totalorder %s161, %s164
      %p173 = scmp.eq.s32.totalorder %s19, 1
      %p174 = por %p172, %p173
      %p175 = scmp.ne.s32.totalorder %s164, %s165
      %p176 = scmp.eq.s32.totalorder %s19, 0
      %p177 = por %p175, %p176
      %p178 = scmp.ne.s32.totalorder %s164, %s165
      %p179 = scmp.eq.s32.totalorder %s20, 1
      %p180 = por %p178, %p179
      %p182 = scmp.ne.s32.totalorder %s165, %s181
      %p183 = scmp.eq.s32.totalorder %s20, 0
      %p184 = por %p182, %p183
      %p185 = scmp.le.s32.totalorder 1, %s14
      %p186 = scmp.lt.s32.totalorder %s14, 3
      %p187 = pnand %p185, %p186
      %p188 = pneg %p187
      // Predicated region
      $region9: #{tpu_custom_call.1} parent=5 // pred_check
        _
      $region10: #{tpu_custom_call.1} parent=5 // pred_check_branch
        %190 = sbr.rel (%p187) target = $region12
      $region11: #{tpu_custom_call.1} parent=5 // pred_region
        %s191 = ssub.s32 %s14, 1
        // Predicated region
        $region13: #{tpu_custom_call.1} parent=11 // pred_check
          %p192 = pneg %p78
        $region14: #{tpu_custom_call.1} parent=11 // pred_check_branch
          %194 = sbr.rel (%p192) target = $region16
        $region15: #{tpu_custom_call.1} parent=11 // pred_region
          %p195 = scmp.lt.s32.totalorder %s24, 0
          %s196 = scalar_select %p195, %s24, 0
          %s197 = smul.addr %s196, 8
          %s198 = scalar_lea.vmem %s1, %s197
        $region16: #{tpu_custom_call.1} parent=11 // pred_fallthru
          _
        // Predicated region
        $region17: #{tpu_custom_call.1} parent=11 // pred_check
          %p199 = pneg %p104
        $region18: #{tpu_custom_call.1} parent=11 // pred_check_branch
          %201 = sbr.rel (%p199) target = $region20
        $region19: #{tpu_custom_call.1} parent=11 // pred_region
          %p202 = scmp.lt.s32.totalorder %s24, 0
          %s203 = scalar_select %p202, %s24, 0
          %s204 = scalar_lea.vmem %s2, %s203
        $region20: #{tpu_custom_call.1} parent=11 // pred_fallthru
          _
        // Predicated region
        $region21: #{tpu_custom_call.1} parent=11 // pred_check
          %p205 = pneg %p130
        $region22: #{tpu_custom_call.1} parent=11 // pred_check_branch
          %207 = sbr.rel (%p205) target = $region24
        $region23: #{tpu_custom_call.1} parent=11 // pred_region
          %s208 = smul.u32 16, %s24
          %p209 = scmp.lt.s32.totalorder %s208, 15
          %s210 = scalar_select %p209, %s208, 15
          %s211 = smul.addr %s210, 8
          %s212 = scalar_lea.vmem %s3, %s211
          %s213 = smul.u32 16, %s24
        $region24: #{tpu_custom_call.1} parent=11 // pred_fallthru
          _
        // Predicated region
        $region25: #{tpu_custom_call.1} parent=11 // pred_check
          %p214 = pneg %p151
        $region26: #{tpu_custom_call.1} parent=11 // pred_check_branch
          %216 = sbr.rel (%p214) target = $region28
        $region27: #{tpu_custom_call.1} parent=11 // pred_region
          _
        $region28: #{tpu_custom_call.1} parent=11 // pred_fallthru
          _
      $region12: #{tpu_custom_call.1} parent=5 // pred_fallthru
        _
      %p217 = scmp.lt.s32.totalorder %s14, 2
      // Predicated region
      $region29: #{tpu_custom_call.1} parent=5 // pred_check
        %p218 = pneg %p217
      $region30: #{tpu_custom_call.1} parent=5 // pred_check_branch
        %220 = sbr.rel (%p218) target = $region32
      $region31: #{tpu_custom_call.1} parent=5 // pred_region
        // Predicated region
        $region33: #{tpu_custom_call.1} parent=31 // pred_check
          %p221 = pneg %p46
        $region34: #{tpu_custom_call.1} parent=31 // pred_check_branch
          %223 = sbr.rel (%p221) target = $region36
        $region35: #{tpu_custom_call.1} parent=31 // pred_region
          %p224 = scmp.lt.s32.totalorder %s21, 1
          %s225 = scalar_select %p224, %s21, 1
          %s226 = smul.addr %s225, 8
          %s227 = scalar_lea.vmem %s0, %s226
        $region36: #{tpu_custom_call.1} parent=31 // pred_fallthru
          _
      $region32: #{tpu_custom_call.1} parent=5 // pred_fallthru
        _
      %p228 = scmp.le.s32.totalorder 1, %s14
      %p229 = scmp.lt.s32.totalorder %s14, 3
      %p230 = pnand %p228, %p229
      %p231 = pneg %p230
      // Predicated region
      $region37: #{tpu_custom_call.1} parent=5 // pred_check
        _
      $region38: #{tpu_custom_call.1} parent=5 // pred_check_branch
        %233 = sbr.rel (%p230) target = $region40
      $region39: #{tpu_custom_call.1} parent=5 // pred_region
        %s234 = ssub.s32 %s14, 1
        %p235 = scmp.lt.s32.totalorder %s23, 1
        %s236 = scalar_select %p235, %s23, 1
        %s237 = smul.addr %s236, 8
        %s238 = scalar_lea.vmem %s0, %s237
        %p239 = pneg %p52
        %p240 = pneg %p49
        %p241 = scmp.lt.s32.totalorder %s24, 0
        %s242 = scalar_select %p241, %s24, 0
        %s243 = smul.addr %s242, 8
        %s244 = scalar_lea.vmem %s1, %s243
        %p245 = pneg %p78
        %p246 = pneg %p75
        %p247 = scmp.lt.s32.totalorder %s24, 0
        %s248 = scalar_select %p247, %s24, 0
        %s249 = scalar_lea.vmem %s2, %s248
        %p250 = pneg %p104
        %p251 = pneg %p101
        %s252 = smul.u32 16, %s24
        %p253 = scmp.lt.s32.totalorder %s252, 15
        %s254 = scalar_select %p253, %s252, 15
        %s255 = smul.addr %s254, 8
        %s256 = scalar_lea.vmem %s3, %s255
        %p257 = pneg %p130
        %p258 = pneg %p127
        %p259 = pneg %p151
        %p260 = pneg %p148
        %p261 = pneg %p177
        %p262 = pneg %p174
        %s263 = sand.u32 %s164, 1
        %s264 = scalar_lea.sflag [#allocation3], %s263
        %s265 = sand.u32 %s164, 1
        %s266 = smul.addr %s265, 8
        %s267 = scalar_lea.vmem [#allocation2], %s266
        %p268 = scmp.lt.s32.totalorder %s23, 1
        %s269 = scalar_select %p268, %s23, 1
        %s270 = smul.addr %s269, 8
        %s271 = scalar_lea.vmem %s0, %s270
        %p272 = scmp.lt.s32.totalorder %s24, 0
        %s273 = scalar_select %p272, %s24, 0
        %s274 = smul.addr %s273, 8
        %s275 = scalar_lea.vmem %s1, %s274
        %p276 = scmp.lt.s32.totalorder %s24, 0
        %s277 = scalar_select %p276, %s24, 0
        %s278 = scalar_lea.vmem %s2, %s277
        %s279 = smul.u32 16, %s24
        %p280 = scmp.lt.s32.totalorder %s279, 15
        %s281 = scalar_select %p280, %s279, 15
        %s282 = smul.addr %s281, 8
        %s283 = scalar_lea.vmem %s3, %s282
        %s284 = smul.u32 16, %s24
        %p285 = scmp.eq.s32.totalorder %s24, 0
        // Predicated region
        $region41: #{tpu_custom_call.1} parent=39 // pred_check
          %p286 = pneg %p285
        $region42: #{tpu_custom_call.1} parent=39 // pred_check_branch
          %288 = sbr.rel (%p286) target = $region44
        $region43: #{tpu_custom_call.1} parent=39 // pred_region
          %vm289 = vcmask 261120
          %290 = vst.msk [vmem:[%s267] sm:$0xff] %vm289, 0.0
        $region44: #{tpu_custom_call.1} parent=39 // pred_fallthru
          _
        %v291 = vld [vmem:[%s267] sm:$0xff]
        %v292 = vld [vmem:[%s275] sm:$0xff]
        %v293 = vld [vmem:[%s275 + $0x8] sm:$0xff]
        %v294 = vld [vmem:[%s275 + $0x10] sm:$0xff]
        %v295 = vld [vmem:[%s275 + $0x18] sm:$0xff]
        %v296 = vld [vmem:[%s271] sm:$0xff]
        %v297 = vld [vmem:[%s278] sm:$0x1]
        %v299 = vlaneseq
        %v300 = vshrl.u32 %v299, 7
        %v301 = vsub.s32 0, %v300
        %v302 = vrot.slane %v297, %v301
        %vm304 = vcmask 261120
        %v306 = vsel %vm304, %v296, 0
        %308 = vmatprep.subr.mxu0 0.0
        %309 = vmatpush1.msra.mxu0 0.0
        %310 = vmatprep.subr.mxu0 0.0
        %311 = vmatpush1.msra.mxu0 0.0
        %312 = vmatprep.subr.mxu0 0.0
        %313 = vmatpush1.msra.mxu0 0.0
        %314 = vmatprep.subr.mxu0 0.0
        %315 = vmatpush1.msra.mxu0 0.0
        %316 = vmatprep.subr.mxu0 0.0
        %317 = vmatpush1.msra.mxu0 0.0
        %318 = vmatprep.subr.mxu0 0.0
        %319 = vmatpush1.msra.mxu0 0.0
        %320 = vmatprep.subr.mxu0 0.0
        %321 = vmatpush1.msra.mxu0 0.0
        %322 = vmatprep.subr.mxu0 0.0
        %323 = vmatpush1.msra.mxu0 0.0
        %324 = vmatprep.subr.mxu0 0.0
        %325 = vmatpush1.msra.mxu0 0.0
        %326 = vmatprep.subr.mxu0 0.0
        %327 = vmatpush1.msra.mxu0 0.0
        %328 = vmatprep.subr.mxu0 0.0
        %329 = vmatpush1.msra.mxu0 0.0
        %330 = vmatprep.subr.mxu0 0.0
        %331 = vmatpush1.msra.mxu0 0.0
        %332 = vmatprep.subr.mxu0 0.0
        %333 = vmatpush1.msra.mxu0 %v295
        %334 = vmatprep.subr.mxu0 0.0
        %335 = vmatpush1.msra.mxu0 %v294
        %336 = vmatprep.subr.mxu0 0.0
        %337 = vmatpush1.msra.mxu0 %v293
        %338 = vmatprep.subr.mxu0 0.0
        %339 = vmatpush1.msra.mxu0 %v292
        %340 = vmatprep.subr.mxu0 0.0
        %341 = vmatpush2.msra.mxu0 0.0
        %342 = vmatprep.subr.mxu0 0.0
        %343 = vmatpush2.msra.mxu0 0.0
        %344 = vmatprep.subr.mxu0 0.0
        %345 = vmatpush2.msra.mxu0 0.0
        %346 = vmatprep.subr.mxu0 0.0
        %347 = vmatpush2.msra.mxu0 0.0
        %348 = vmatprep.subr.mxu0 0.0
        %349 = vmatpush2.msra.mxu0 0.0
        %350 = vmatprep.subr.mxu0 0.0
        %351 = vmatpush2.msra.mxu0 0.0
        %352 = vmatprep.subr.mxu0 0.0
        %353 = vmatpush2.msra.mxu0 0.0
        %354 = vmatprep.subr.mxu0 0.0
        %355 = vmatpush2.msra.mxu0 0.0
        %356 = vmatprep.subr.mxu0 0.0
        %357 = vmatpush2.msra.mxu0 0.0
        %358 = vmatprep.subr.mxu0 0.0
        %359 = vmatpush2.msra.mxu0 0.0
        %360 = vmatprep.subr.mxu0 0.0
        %361 = vmatpush2.msra.mxu0 0.0
        %362 = vmatprep.subr.mxu0 0.0
        %363 = vmatpush2.msra.mxu0 0.0
        %364 = vmatprep.subr.mxu0 0.0
        %365 = vmatpush2.msra.mxu0 0.0
        %366 = vmatprep.subr.mxu0 0.0
        %367 = vmatpush2.msra.mxu0 0.0
        %368 = vmatprep.subr.mxu0 0.0
        %369 = vmatpush2.msra.mxu0 0.0
        %370 = vmatprep.subr.mxu0 0.0
        %371 = vmatpush2.msra.mxu0 0.0
        %372 = vmatprep.mubr.f32.mxu0 0.0
        %373 = vmatmul.mubr.f32.gmra.mxu0 %v306
        %v374 = vpop.f32.mrf.mxu0
        %v375 = vadd.f32 %v302, %v374
        %v376 = vpop.f32.mrf.mxu0
        %377 = vdwg.mxu0
        %v378 = vmul.f32 %v375, 0.5
        %v379 = vmul.f32 %v375, 0.70710677
        %v380 = vand.u32 2147483647, %v379
        %v381 = vmul.f32 %v380, 0.3275911
        %v382 = vadd.f32 %v381, 1.0
        %v383 = vrcp.pop %v382
        %v384 = vmul.f32 %v383, 1.0614054
        %v385 = vadd.f32 %v384, -1.4531521
        %v386 = vmul.f32 %v385, %v383
        %v387 = vadd.f32 %v386, 1.4214138
        %v388 = vmul.f32 %v387, %v383
        %v389 = vadd.f32 %v388, -0.28449672
        %v390 = vmul.f32 %v389, %v383
        %v391 = vadd.f32 %v390, 0.2548296
        %v392 = vmul.f32 %v391, %v383
        %v393 = vsub.f32 0.0, %v380
        %v394 = vmul.f32 %v393, %v380
        %v395 = vmul.f32 %v394, 1.442695
        %v396 = vpow.pop %v395
        %v397 = vmul.f32 %v392, %v396
        %v398 = vsub.f32 1.0, %v397
        %vm399 = vcmp.lt.f32.partialorder %v379, 0.0
        %v400 = vsub.f32 0.0, %v398
        %v401 = vsel %vm399, %v400, %v398
        %v402 = vadd.f32 %v401, 1.0
        %v403 = vmul.f32 %v378, %v402
        %v404 = vld [vmem:[%s283] sm:$0xff]
        %v405 = vld [vmem:[%s283 + $0x8] sm:$0xff]
        %v406 = vld [vmem:[%s283 + $0x10] sm:$0xff]
        %v407 = vld [vmem:[%s283 + $0x18] sm:$0xff]
        %v408 = vld [vmem:[%s283 + $0x20] sm:$0xff]
        %v409 = vld [vmem:[%s283 + $0x28] sm:$0xff]
        %v410 = vld [vmem:[%s283 + $0x30] sm:$0xff]
        %v411 = vld [vmem:[%s283 + $0x38] sm:$0xff]
        %v412 = vld [vmem:[%s283 + $0x40] sm:$0xff]
        %v413 = vld [vmem:[%s283 + $0x48] sm:$0xff]
        %v414 = vld [vmem:[%s283 + $0x50] sm:$0xff]
        %v415 = vld [vmem:[%s283 + $0x58] sm:$0xff]
        %v416 = vld [vmem:[%s283 + $0x60] sm:$0xff]
        %v417 = vld [vmem:[%s283 + $0x68] sm:$0xff]
        %v418 = vld [vmem:[%s283 + $0x70] sm:$0xff]
        %v419 = vld [vmem:[%s283 + $0x78] sm:$0xff]
        %420 = vmatprep.subr.mxu0 0.0
        %421 = vmatpush1.msra.mxu0 %v419
        %422 = vmatprep.subr.mxu0 0.0
        %423 = vmatpush1.msra.mxu0 %v418
        %424 = vmatprep.subr.mxu0 0.0
        %425 = vmatpush1.msra.mxu0 %v417
        %426 = vmatprep.subr.mxu0 0.0
        %427 = vmatpush1.msra.mxu0 %v416
        %428 = vmatprep.subr.mxu0 0.0
        %429 = vmatpush1.msra.mxu0 %v415
        %430 = vmatprep.subr.mxu0 0.0
        %431 = vmatpush1.msra.mxu0 %v414
        %432 = vmatprep.subr.mxu0 0.0
        %433 = vmatpush1.msra.mxu0 %v413
        %434 = vmatprep.subr.mxu0 0.0
        %435 = vmatpush1.msra.mxu0 %v412
        %436 = vmatprep.subr.mxu0 0.0
        %437 = vmatpush1.msra.mxu0 %v411
        %438 = vmatprep.subr.mxu0 0.0
        %439 = vmatpush1.msra.mxu0 %v410
        %440 = vmatprep.subr.mxu0 0.0
        %441 = vmatpush1.msra.mxu0 %v409
        %442 = vmatprep.subr.mxu0 0.0
        %443 = vmatpush1.msra.mxu0 %v408
        %444 = vmatprep.subr.mxu0 0.0
        %445 = vmatpush1.msra.mxu0 %v407
        %446 = vmatprep.subr.mxu0 0.0
        %447 = vmatpush1.msra.mxu0 %v406
        %448 = vmatprep.subr.mxu0 0.0
        %449 = vmatpush1.msra.mxu0 %v405
        %450 = vmatprep.subr.mxu0 0.0
        %451 = vmatpush1.msra.mxu0 %v404
        %452 = vmatprep.subr.mxu0 0.0
        %453 = vmatpush2.msra.mxu0 0.0
        %454 = vmatprep.subr.mxu0 0.0
        %455 = vmatpush2.msra.mxu0 0.0
        %456 = vmatprep.subr.mxu0 0.0
        %457 = vmatpush2.msra.mxu0 0.0
        %458 = vmatprep.subr.mxu0 0.0
        %459 = vmatpush2.msra.mxu0 0.0
        %460 = vmatprep.subr.mxu0 0.0
        %461 = vmatpush2.msra.mxu0 0.0
        %462 = vmatprep.subr.mxu0 0.0
        %463 = vmatpush2.msra.mxu0 0.0
        %464 = vmatprep.subr.mxu0 0.0
        %465 = vmatpush2.msra.mxu0 0.0
        %466 = vmatprep.subr.mxu0 0.0
        %467 = vmatpush2.msra.mxu0 0.0
        %468 = vmatprep.subr.mxu0 0.0
        %469 = vmatpush2.msra.mxu0 0.0
        %470 = vmatprep.subr.mxu0 0.0
        %471 = vmatpush2.msra.mxu0 0.0
        %472 = vmatprep.subr.mxu0 0.0
        %473 = vmatpush2.msra.mxu0 0.0
        %474 = vmatprep.subr.mxu0 0.0
        %475 = vmatpush2.msra.mxu0 0.0
        %476 = vmatprep.subr.mxu0 0.0
        %477 = vmatpush2.msra.mxu0 0.0
        %478 = vmatprep.subr.mxu0 0.0
        %479 = vmatpush2.msra.mxu0 0.0
        %480 = vmatprep.subr.mxu0 0.0
        %481 = vmatpush2.msra.mxu0 0.0
        %482 = vmatprep.subr.mxu0 0.0
        %483 = vmatpush2.msra.mxu0 0.0
        %484 = vmatprep.mubr.f32.mxu0 0.0
        %485 = vmatmul.mubr.f32.gmra.mxu0 %v403
        %v486 = vpop.f32.mrf.mxu0
        %v487 = vadd.f32 0.0, %v486
        %v488 = vpop.f32.mrf.mxu0
        %489 = vdwg.mxu0
        %v490 = vadd.f32 %v291, %v487
        %491 = vst.msk [vmem:[%s267] sm:$0xff] %vm304, %v490
        // Predicated region
        $region45: #{tpu_custom_call.1} parent=39 // pred_check
          %p492 = pneg %p285
        $region46: #{tpu_custom_call.1} parent=39 // pred_check_branch
          %494 = sbr.rel (%p492) target = $region48
        $region47: #{tpu_custom_call.1} parent=39 // pred_region
          %v495 = vld [vmem:[%s267] sm:$0xff]
          %v496 = vld [vmem:[%s4] sm:$0x1]
          %v498 = vlaneseq
          %v499 = vshrl.u32 %v498, 7
          %v500 = vsub.s32 0, %v499
          %v501 = vrot.slane %v496, %v500
          %v503 = vadd.f32 %v495, %v501
          %504 = vst.msk [vmem:[%s267] sm:$0xff] %vm304, %v503
        $region48: #{tpu_custom_call.1} parent=39 // pred_fallthru
          _
        %s505 = sand.u32 %s164, 1
        %s506 = scalar_lea.sflag [#allocation3], %s505
        %s507 = sand.u32 %s164, 1
        %s508 = smul.addr %s507, 8
        %s509 = scalar_lea.vmem [#allocation2], %s508
        // Predicated region
        $region49: #{tpu_custom_call.1} parent=39 // pred_check
          %p510 = pneg %p174
        $region50: #{tpu_custom_call.1} parent=39 // pred_check_branch
          %512 = sbr.rel (%p510) target = $region52
        $region51: #{tpu_custom_call.1} parent=39 // pred_region
          %s514 = ssub.s32 128, 128
          %515 = vsyncadd %s506, %s514
          %s516 = smul.addr %s23, 128
          %s517 = scalar_lea.hbm %s5, %s516
          %s519 = sshll.u32 %s509, 4
          %s520 = int_to_ptr.vmem [resolvable:$true] %s519
          %522 = dma.vmem_to_hbm [thread:$0]  %s520, 128, %s517, %s506
        $region52: #{tpu_custom_call.1} parent=39 // pred_fallthru
          _
      $region40: #{tpu_custom_call.1} parent=5 // pred_fallthru
        _
      %p523 = scmp.le.s32.totalorder 2, %s14
      // Predicated region
      $region53: #{tpu_custom_call.1} parent=5 // pred_check
        %p524 = pneg %p523
      $region54: #{tpu_custom_call.1} parent=5 // pred_check_branch
        %526 = sbr.rel (%p524) target = $region56
      $region55: #{tpu_custom_call.1} parent=5 // pred_region
        %s527 = ssub.s32 %s14, 2
        // Predicated region
        $region57: #{tpu_custom_call.1} parent=55 // pred_check
          %p528 = pneg %p180
        $region58: #{tpu_custom_call.1} parent=55 // pred_check_branch
          %530 = sbr.rel (%p528) target = $region60
        $region59: #{tpu_custom_call.1} parent=55 // pred_region
          %s531 = sand.u32 %s165, 1
          %s532 = scalar_lea.sflag [#allocation3], %s531
          %s533 = sand.u32 %s165, 1
          %s534 = smul.addr %s533, 8
          %s535 = scalar_lea.vmem [#allocation2], %s534
          %536 = dma.done %s532, 128
        $region60: #{tpu_custom_call.1} parent=55 // pred_fallthru
          _
      $region56: #{tpu_custom_call.1} parent=5 // pred_fallthru
        _
    $region6: #{tpu_custom_call.1} parent=1 // loop_footer
      %s18 = sadd.s32 1, %s14
    $region7: #{tpu_custom_call.1} parent=1 // loop_footer_branch
      %13 = sbr.rel target = $region3
    $region8: #{tpu_custom_call.1} parent=1 // loop_exit
      _
    %537 = vsyncpa [#allocation3], 1
    %s538 = scalar_lea.sflag [#allocation3], 1
    %539 = vsyncpa %s538, 1

</llo_original>
